<compile_context>
chip_gen: v6e
topology: v6e:2x2x1
jax: 0.10.0
libtpu: 0.0.40
codegen_flags: <defaults>
</compile_context>

<pallas_src>
import functools

import jax
import jax.numpy as jnp
from jax import lax
from jax.experimental import pallas as pl
from jax.experimental.pallas import tpu as pltpu

LANE = 128
SUB = 8


def _round_up(x, m):
    return ((x + m - 1) // m) * m


def skip_gram_kernel(ids_ref, tbl_ref, out_ref):
    # ids_ref : VMEM (tile_b, 1)              int32
    # tbl_ref : VMEM (n_items_p, out_pad)     param_dtype
    #           precomputed  emb @ W^T + b ; pad columns carry -1e30 so they
    #           vanish under softmax; pad rows are never selected (ids clamped).
    # out_ref : VMEM (tile_b, out_pad)        float32
    tb = out_ref.shape[0]
    n_items_p = tbl_ref.shape[0]

    # Vectorized one-hot gather of the fused logits table on the MXU:
    #   (tb, n_items_p) @ (n_items_p, out_pad)  ->  logits (bias already folded in).
    ids = ids_ref[...]                                              # (tb, 1) int32
    col = lax.broadcasted_iota(jnp.int32, (tb, n_items_p), 1)       # (tb, n_items_p)
    one_hot = (col == ids).astype(tbl_ref.dtype)                    # exact 0/1
    logits = jnp.dot(one_hot, tbl_ref[...],
                     preferred_element_type=jnp.float32)            # (tb, out_pad) f32

    # Numerically-stable softmax over the lane-dense padded axis.
    # Padded columns are -1e30 -> exp underflows to exactly 0.
    m = jnp.max(logits, axis=-1, keepdims=True)
    e = jnp.exp(logits - m)
    denom = jnp.sum(e, axis=-1, keepdims=True)
    # Exact divide so every row sums to 1 to f32 accuracy (perf review: exact
    # reciprocal is essentially free at these sizes; the approx EUP path broke
    # the sum-to-1 check).
    out_ref[...] = (e / denom).astype(out_ref.dtype)


def prepare_skip_gram_params(emb_table, fc_weight, fc_bias, *,
                             param_dtype=jnp.float32):
    """One-time parameter prep (hoisted out of the per-call path).

    Fuses the embedding table and the linear layer:
        one_hot @ emb @ W^T + b  ==  one_hot @ (emb @ W^T + b)
    (exact because each one-hot row has a single 1), pads to TPU-friendly
    shapes, and casts to `param_dtype` (use bf16 on v6e/v7x).

    Returns the padded (n_items_p, out_pad) logits table.
    """
    n_items, emb_dim = emb_table.shape
    n_output = fc_weight.shape[0]
    n_items_p = _round_up(n_items, SUB)      # sublane-aligned one-hot K
    out_pad = _round_up(n_output, LANE)      # lane-dense output N

    fused = jnp.dot(emb_table.astype(jnp.float32),
                    fc_weight.T.astype(jnp.float32),
                    precision=jax.lax.Precision.HIGHEST)
    fused = fused + fc_bias.astype(jnp.float32)[None, :]            # (n_items, n_output)

    tbl = jnp.full((n_items_p, out_pad), -1e30, jnp.float32)        # pad cols -> 0 prob
    tbl = tbl.at[:n_items, :n_output].set(fused)
    return tbl.astype(param_dtype)


def skip_gram_forward(item_ids, logits_table, n_items, n_output, *,
                      tile_b=128, num_tensorcores=1):
    """Forward of the PyTorch `skip_gram` module.

    item_ids     : (B,) int32 indices into the embedding table.
    logits_table : output of prepare_skip_gram_params (n_items_p, out_pad).
    returns      : (B, n_output) f32 softmax probabilities.
    """
    B = item_ids.shape[0]
    n_items_p, out_pad = logits_table.shape

    # Batch tile: fill the MXU M dimension (up to 128 rows).  On v7x pass
    # num_tensorcores=2 so the "parallel" grid axis has >= 2 steps and both
    # TensorCores get work.
    tb = min(_round_up(tile_b, SUB), _round_up(B, SUB))
    if num_tensorcores > 1 and B > SUB:
        tb = min(tb, max(SUB, _round_up(pl.cdiv(B, num_tensorcores), SUB)))
    B_pad = _round_up(B, tb)

    # Per-call input prep: pad the batch and clamp ids (guard against OOB gather).
    ids_p = jnp.zeros((B_pad, 1), jnp.int32).at[:B, 0].set(item_ids.astype(jnp.int32))
    ids_p = jnp.clip(ids_p, 0, n_items - 1)

    grid = (B_pad // tb,)

    cost = pl.CostEstimate(
        flops=int(2 * B_pad * n_items_p * out_pad),        # one-hot gather matmul
        transcendentals=int(B_pad * out_pad),              # exp in the softmax
        bytes_accessed=int(logits_table.size * logits_table.dtype.itemsize
                           + ids_p.size * 4 + B_pad * out_pad * 4),
    )

    grid_spec = pltpu.PrefetchScalarGridSpec(
        num_scalar_prefetch=0,
        grid=grid,
        in_specs=[
            pl.BlockSpec((tb, 1), lambda i: (i, 0)),                 # ids (per-tile)
            # Grid-invariant fused logits table: single-buffered (never
            # re-fetched, so double buffering would just waste VMEM).
            pl.BlockSpec((n_items_p, out_pad), lambda i: (0, 0),
                         pipeline_mode=pl.Buffered(buffer_count=1)),
        ],
        out_specs=pl.BlockSpec((tb, out_pad), lambda i: (i, 0)),
    )

    out = pl.pallas_call(
        skip_gram_kernel,
        out_shape=jax.ShapeDtypeStruct((B_pad, out_pad), jnp.float32),
        grid_spec=grid_spec,
        compiler_params=pltpu.CompilerParams(
            dimension_semantics=("parallel",),
            vmem_limit_bytes=64 * 1024 * 1024),
        cost_estimate=cost,
    )(ids_p, logits_table)

    return out[:B, :n_output]


if __name__ == "__main__":
    # Small shapes consistent with the module (emb_dim fixed at 30 in pipe_1.py).
    emb_dim = 30
    n_items = 64
    n_output = 20
    B = 128

    key = jax.random.PRNGKey(0)
    k_emb, k_w, k_b, k_ids = jax.random.split(key, 4)

    emb_table = jax.random.normal(k_emb, (n_items, emb_dim), jnp.float32)
    fc_weight = jax.random.normal(k_w, (n_output, emb_dim), jnp.float32) * 0.1
    fc_bias = jax.random.normal(k_b, (n_output,), jnp.float32) * 0.1
    item_ids = jax.random.randint(k_ids, (B,), 0, n_items, dtype=jnp.int32)

    # One-time parameter prep (fused emb @ W^T + b table, padded, cast).
    # Use param_dtype=jnp.bfloat16 on v6e/v7x; f32 here for a tight reference match.
    tbl = prepare_skip_gram_params(emb_table, fc_weight, fc_bias,
                                   param_dtype=jnp.float32)

    fwd = functools.partial(skip_gram_forward, tile_b=128, num_tensorcores=1)
    out = jax.block_until_ready(fwd(item_ids, tbl, n_items, n_output))

    # Pure-JAX reference of the PyTorch forward: softmax(emb[ids] @ W.T + b, -1)
    ref = jax.nn.softmax(
        jnp.dot(emb_table[item_ids], fc_weight.T,
                precision=jax.lax.Precision.HIGHEST) + fc_bias, axis=-1)

    assert out.shape == (B, n_output)
    # Tolerance covers the default-precision (bf16-pass) MXU gather of the f32
    # table on real hardware; interpret mode matches much tighter than this.
    assert jnp.allclose(out, ref, atol=2e-3, rtol=2e-3), "mismatch vs reference"
    assert jnp.allclose(jnp.sum(out, axis=-1), 1.0, atol=1e-3), "rows must sum to 1"
    print("KERNEL_OK")
</pallas_src>

<mosaic_0001>
module attributes {stable_mosaic.version = 11 : i64} {
  func.func @skip_gram_kernel(%arg0: i32, %arg1: memref<128x1xi32, #tpu.memory_space<vmem>>, %arg2: memref<64x128xf32, #tpu.memory_space<vmem>>, %arg3: memref<128x128xf32, #tpu.memory_space<vmem>>) attributes {dimension_semantics = [#tpu.dimension_semantics<parallel>], iteration_bounds = array<i64: 1>, scalar_prefetch = 0 : i64, scratch_operands = 0 : i64, tpu.core_type = #tpu.core_type<tc>, window_params = [{transform_indices = @transform_0, window_bounds = array<i64: 128, 1>}, {pipeline_mode = #tpu.pipeline_mode<synchronous>, transform_indices = @transform_1, window_bounds = array<i64: 64, 128>}, {transform_indices = @transform_2, window_bounds = array<i64: 128, 128>}]} {
    %c0 = arith.constant 0 : index
    %c0_0 = arith.constant 0 : index
    %0 = vector.load %arg1[%c0, %c0_0] : memref<128x1xi32, #tpu.memory_space<vmem>>, vector<128x1xi32>
    %1 = tpu.iota {dimensions = array<i32: 1>} : vector<128x64xi32>
    %2 = vector.broadcast %0 : vector<128x1xi32> to vector<128x64xi32>
    %3 = arith.cmpi eq, %1, %2 : vector<128x64xi32>
    %4 = arith.extui %3 : vector<128x64xi1> to vector<128x64xi32>
    %5 = arith.sitofp %4 : vector<128x64xi32> to vector<128x64xf32>
    %c0_1 = arith.constant 0 : index
    %c0_2 = arith.constant 0 : index
    %6 = vector.load %arg2[%c0_1, %c0_2] : memref<64x128xf32, #tpu.memory_space<vmem>>, vector<64x128xf32>
    %cst = arith.constant dense<0.000000e+00> : vector<128x128xf32>
    %7 = tpu.matmul %5, %6, %cst {dimension_numbers = #tpu.dot_dimension_numbers<[1], [0], [0], [1], [0, 0, 1, 1], [], []>} : vector<128x64xf32>, vector<64x128xf32>, vector<128x128xf32> -> vector<128x128xf32>
    %cst_3 = arith.constant dense<0xFF800000> : vector<128xf32>
    %8 = vector.multi_reduction <maximumf>, %7, %cst_3 [1] : vector<128x128xf32> to vector<128xf32>
    %9 = vector.shape_cast %8 : vector<128xf32> to vector<128x1xf32>
    %10 = vector.broadcast %9 : vector<128x1xf32> to vector<128x128xf32>
    %11 = arith.subf %7, %10 : vector<128x128xf32>
    %12 = math.exp %11 : vector<128x128xf32>
    %cst_4 = arith.constant dense<0.000000e+00> : vector<128xf32>
    %13 = vector.multi_reduction <add>, %12, %cst_4 [1] : vector<128x128xf32> to vector<128xf32>
    %14 = vector.shape_cast %13 : vector<128xf32> to vector<128x1xf32>
    %15 = vector.broadcast %14 : vector<128x1xf32> to vector<128x128xf32>
    %16 = arith.divf %12, %15 : vector<128x128xf32>
    %c0_5 = arith.constant 0 : index
    %c0_6 = arith.constant 0 : index
    %17 = vector.load %arg3[%c0_5, %c0_6] : memref<128x128xf32, #tpu.memory_space<vmem>>, vector<128x128xf32>
    tpu.vector_store %arg3[%c0_5, %c0_6], %16 {strides = array<i32>} : memref<128x128xf32, #tpu.memory_space<vmem>>, vector<128x128xf32>,
    return
  }
  func.func @transform_0(%arg0: i32) -> (i32, i32) {
    %c0_i32 = arith.constant 0 : i32
    %c0_i32_0 = arith.constant 0 : i32
    return %arg0, %c0_i32 : i32, i32
  }
  func.func @transform_1(%arg0: i32) -> (i32, i32) {
    %c0_i32 = arith.constant 0 : i32
    %c0_i32_0 = arith.constant 0 : i32
    %c0_i32_1 = arith.constant 0 : i32
    return %c0_i32, %c0_i32_0 : i32, i32
  }
  func.func @transform_2(%arg0: i32) -> (i32, i32) {
    %c0_i32 = arith.constant 0 : i32
    %c0_i32_0 = arith.constant 0 : i32
    return %arg0, %c0_i32 : i32, i32
  }
}

</mosaic_0001>

<llo_original>
// kernel: tpu_custom_call.1
$region0: #{tpu_custom_call.1}
  #allocation0 [shape = 'u32[]', space=smem, size = 0x4, offset = 0x4, fixed_abs, tag = 'smem constant byte address 0x4 - core index']
  #allocation1 [shape = 'u32[144,128]{1,0:T(1,128)}', space=vmem, size = 0x12000, scoped, tag = 'internal scratch']
  %s0 = inlined_call_operand.vmem [shape: s32[128,1], index: 0, kind: input, shape index: {}]
  %s1 = inlined_call_operand.vmem [shape: f32[64,128], index: 1, kind: input, shape index: {}]
  %s2 = inlined_call_operand.hbm [shape: f32[128,128], index: 2, kind: output, shape index: {}]
  %s3 = sld [smem:[#allocation0]]
  $region18: #{tpu_custom_call.1} parent=0
    _
  %s5 = ssub.s32 1, %s3
  %s6 = scalar_select 0, %s5, %s3
  $region1: #{tpu_custom_call.1} parent=0
    #allocation2 [shape = 'u8[65536]{0}', space=vmem, size = 0x10000, scoped, tag = 'output window, operand 0, single buffered']
    #allocation3 [shape = 's32[1]{0}', space=sflag, size = 0x4, scoped, tag = 'scoped memory for tpu_custom_call.1']
    %7 = vsyncpa [#allocation3], 0
    // Predicated region
    $region2: #{tpu_custom_call.1} parent=1 // pred_check
      _
    $region3: #{tpu_custom_call.1} parent=1 // pred_check_branch
      %9 = sbr.rel (0) target = $region5
    $region4: #{tpu_custom_call.1} parent=1 // pred_region
      _
    $region5: #{tpu_custom_call.1} parent=1 // pred_fallthru
      _
    // Predicated region
    $region6: #{tpu_custom_call.1} parent=1 // pred_check
      _
    $region7: #{tpu_custom_call.1} parent=1 // pred_check_branch
      %11 = sbr.rel (0) target = $region9
    $region8: #{tpu_custom_call.1} parent=1 // pred_region
      _
    $region9: #{tpu_custom_call.1} parent=1 // pred_fallthru
      _
    %v12 = vld [vmem:[%s0] sm:$0xff]
    %v13 = vld [vmem:[%s0 + $0x8] sm:$0xff]
    %v14 = vld [vmem:[%s0 + $0x10] sm:$0xff]
    %v15 = vld [vmem:[%s0 + $0x18] sm:$0xff]
    %v16 = vld [vmem:[%s0 + $0x20] sm:$0xff]
    %v17 = vld [vmem:[%s0 + $0x28] sm:$0xff]
    %v18 = vld [vmem:[%s0 + $0x30] sm:$0xff]
    %v19 = vld [vmem:[%s0 + $0x38] sm:$0xff]
    %v20 = vld [vmem:[%s0 + $0x40] sm:$0xff]
    %v21 = vld [vmem:[%s0 + $0x48] sm:$0xff]
    %v22 = vld [vmem:[%s0 + $0x50] sm:$0xff]
    %v23 = vld [vmem:[%s0 + $0x58] sm:$0xff]
    %v24 = vld [vmem:[%s0 + $0x60] sm:$0xff]
    %v25 = vld [vmem:[%s0 + $0x68] sm:$0xff]
    %v26 = vld [vmem:[%s0 + $0x70] sm:$0xff]
    %v27 = vld [vmem:[%s0 + $0x78] sm:$0xff]
    %v28 = vlaneseq
    %v29 = vand.u32 %v28, 127
    %30 = vset.pattern.permute.xlu0 0
    %31 = vperm.xlu0 %30, %v12
    %v32 = vpop.permute.xlu0 %31
    %33 = vset.pattern.permute.xlu0 0
    %34 = vperm.xlu0 %33, %v13
    %v35 = vpop.permute.xlu0 %34
    %36 = vset.pattern.permute.xlu0 0
    %37 = vperm.xlu0 %36, %v14
    %v38 = vpop.permute.xlu0 %37
    %39 = vset.pattern.permute.xlu0 0
    %40 = vperm.xlu0 %39, %v15
    %v41 = vpop.permute.xlu0 %40
    %42 = vset.pattern.permute.xlu0 0
    %43 = vperm.xlu0 %42, %v16
    %v44 = vpop.permute.xlu0 %43
    %45 = vset.pattern.permute.xlu0 0
    %46 = vperm.xlu0 %45, %v17
    %v47 = vpop.permute.xlu0 %46
    %48 = vset.pattern.permute.xlu0 0
    %49 = vperm.xlu0 %48, %v18
    %v50 = vpop.permute.xlu0 %49
    %51 = vset.pattern.permute.xlu0 0
    %52 = vperm.xlu0 %51, %v19
    %v53 = vpop.permute.xlu0 %52
    %54 = vset.pattern.permute.xlu0 0
    %55 = vperm.xlu0 %54, %v20
    %v56 = vpop.permute.xlu0 %55
    %57 = vset.pattern.permute.xlu0 0
    %58 = vperm.xlu0 %57, %v21
    %v59 = vpop.permute.xlu0 %58
    %60 = vset.pattern.permute.xlu0 0
    %61 = vperm.xlu0 %60, %v22
    %v62 = vpop.permute.xlu0 %61
    %63 = vset.pattern.permute.xlu0 0
    %64 = vperm.xlu0 %63, %v23
    %v65 = vpop.permute.xlu0 %64
    %66 = vset.pattern.permute.xlu0 0
    %67 = vperm.xlu0 %66, %v24
    %v68 = vpop.permute.xlu0 %67
    %69 = vset.pattern.permute.xlu0 0
    %70 = vperm.xlu0 %69, %v25
    %v71 = vpop.permute.xlu0 %70
    %72 = vset.pattern.permute.xlu0 0
    %73 = vperm.xlu0 %72, %v26
    %v74 = vpop.permute.xlu0 %73
    %75 = vset.pattern.permute.xlu0 0
    %76 = vperm.xlu0 %75, %v27
    %v77 = vpop.permute.xlu0 %76
    %vm78 = vcmp.eq.s32.totalorder %v29, %v32
    %vm79 = vcmp.eq.s32.totalorder %v29, %v35
    %vm80 = vcmp.eq.s32.totalorder %v29, %v38
    %vm81 = vcmp.eq.s32.totalorder %v29, %v41
    %vm82 = vcmp.eq.s32.totalorder %v29, %v44
    %vm83 = vcmp.eq.s32.totalorder %v29, %v47
    %vm84 = vcmp.eq.s32.totalorder %v29, %v50
    %vm85 = vcmp.eq.s32.totalorder %v29, %v53
    %vm86 = vcmp.eq.s32.totalorder %v29, %v56
    %vm87 = vcmp.eq.s32.totalorder %v29, %v59
    %vm88 = vcmp.eq.s32.totalorder %v29, %v62
    %vm89 = vcmp.eq.s32.totalorder %v29, %v65
    %vm90 = vcmp.eq.s32.totalorder %v29, %v68
    %vm91 = vcmp.eq.s32.totalorder %v29, %v71
    %vm92 = vcmp.eq.s32.totalorder %v29, %v74
    %vm93 = vcmp.eq.s32.totalorder %v29, %v77
    %v94 = vsel %vm78, 1, 0
    %v95 = vsel %vm79, 1, 0
    %v96 = vsel %vm80, 1, 0
    %v97 = vsel %vm81, 1, 0
    %v98 = vsel %vm82, 1, 0
    %v99 = vsel %vm83, 1, 0
    %v100 = vsel %vm84, 1, 0
    %v101 = vsel %vm85, 1, 0
    %v102 = vsel %vm86, 1, 0
    %v103 = vsel %vm87, 1, 0
    %v104 = vsel %vm88, 1, 0
    %v105 = vsel %vm89, 1, 0
    %v106 = vsel %vm90, 1, 0
    %v107 = vsel %vm91, 1, 0
    %v108 = vsel %vm92, 1, 0
    %v109 = vsel %vm93, 1, 0
    %v110 = vcvt.s32.f32 %v94
    %v111 = vcvt.s32.f32 %v95
    %v112 = vcvt.s32.f32 %v96
    %v113 = vcvt.s32.f32 %v97
    %v114 = vcvt.s32.f32 %v98
    %v115 = vcvt.s32.f32 %v99
    %v116 = vcvt.s32.f32 %v100
    %v117 = vcvt.s32.f32 %v101
    %v118 = vcvt.s32.f32 %v102
    %v119 = vcvt.s32.f32 %v103
    %v120 = vcvt.s32.f32 %v104
    %v121 = vcvt.s32.f32 %v105
    %v122 = vcvt.s32.f32 %v106
    %v123 = vcvt.s32.f32 %v107
    %v124 = vcvt.s32.f32 %v108
    %v125 = vcvt.s32.f32 %v109
    %v126 = vld [vmem:[%s1] sm:$0xff]
    %v127 = vld [vmem:[%s1 + $0x8] sm:$0xff]
    %v128 = vld [vmem:[%s1 + $0x10] sm:$0xff]
    %v129 = vld [vmem:[%s1 + $0x18] sm:$0xff]
    %v130 = vld [vmem:[%s1 + $0x20] sm:$0xff]
    %v131 = vld [vmem:[%s1 + $0x28] sm:$0xff]
    %v132 = vld [vmem:[%s1 + $0x30] sm:$0xff]
    %v133 = vld [vmem:[%s1 + $0x38] sm:$0xff]
    %vm134 = vcmask 523264
    %v136 = vsel %vm134, %v110, 0
    %v139 = vsel %vm134, %v111, 0
    %v142 = vsel %vm134, %v112, 0
    %v145 = vsel %vm134, %v113, 0
    %v148 = vsel %vm134, %v114, 0
    %v151 = vsel %vm134, %v115, 0
    %v154 = vsel %vm134, %v116, 0
    %v157 = vsel %vm134, %v117, 0
    %v160 = vsel %vm134, %v118, 0
    %v163 = vsel %vm134, %v119, 0
    %v166 = vsel %vm134, %v120, 0
    %v169 = vsel %vm134, %v121, 0
    %v172 = vsel %vm134, %v122, 0
    %v175 = vsel %vm134, %v123, 0
    %v178 = vsel %vm134, %v124, 0
    %v181 = vsel %vm134, %v125, 0
    %183 = vmatprep.subr.mxu0 0.0
    %184 = vmatpush1.msra.mxu0 0.0
    %185 = vmatprep.subr.mxu0 0.0
    %186 = vmatpush1.msra.mxu0 0.0
    %187 = vmatprep.subr.mxu0 0.0
    %188 = vmatpush1.msra.mxu0 0.0
    %189 = vmatprep.subr.mxu0 0.0
    %190 = vmatpush1.msra.mxu0 0.0
    %191 = vmatprep.subr.mxu0 0.0
    %192 = vmatpush1.msra.mxu0 0.0
    %193 = vmatprep.subr.mxu0 0.0
    %194 = vmatpush1.msra.mxu0 0.0
    %195 = vmatprep.subr.mxu0 0.0
    %196 = vmatpush1.msra.mxu0 0.0
    %197 = vmatprep.subr.mxu0 0.0
    %198 = vmatpush1.msra.mxu0 0.0
    %199 = vmatprep.subr.mxu0 0.0
    %200 = vmatpush1.msra.mxu0 %v133
    %201 = vmatprep.subr.mxu0 0.0
    %202 = vmatpush1.msra.mxu0 %v132
    %203 = vmatprep.subr.mxu0 0.0
    %204 = vmatpush1.msra.mxu0 %v131
    %205 = vmatprep.subr.mxu0 0.0
    %206 = vmatpush1.msra.mxu0 %v130
    %207 = vmatprep.subr.mxu0 0.0
    %208 = vmatpush1.msra.mxu0 %v129
    %209 = vmatprep.subr.mxu0 0.0
    %210 = vmatpush1.msra.mxu0 %v128
    %211 = vmatprep.subr.mxu0 0.0
    %212 = vmatpush1.msra.mxu0 %v127
    %213 = vmatprep.subr.mxu0 0.0
    %214 = vmatpush1.msra.mxu0 %v126
    %215 = vmatprep.subr.mxu0 0.0
    %216 = vmatpush2.msra.mxu0 0.0
    %217 = vmatprep.subr.mxu0 0.0
    %218 = vmatpush2.msra.mxu0 0.0
    %219 = vmatprep.subr.mxu0 0.0
    %220 = vmatpush2.msra.mxu0 0.0
    %221 = vmatprep.subr.mxu0 0.0
    %222 = vmatpush2.msra.mxu0 0.0
    %223 = vmatprep.subr.mxu0 0.0
    %224 = vmatpush2.msra.mxu0 0.0
    %225 = vmatprep.subr.mxu0 0.0
    %226 = vmatpush2.msra.mxu0 0.0
    %227 = vmatprep.subr.mxu0 0.0
    %228 = vmatpush2.msra.mxu0 0.0
    %229 = vmatprep.subr.mxu0 0.0
    %230 = vmatpush2.msra.mxu0 0.0
    %231 = vmatprep.subr.mxu0 0.0
    %232 = vmatpush2.msra.mxu0 0.0
    %233 = vmatprep.subr.mxu0 0.0
    %234 = vmatpush2.msra.mxu0 0.0
    %235 = vmatprep.subr.mxu0 0.0
    %236 = vmatpush2.msra.mxu0 0.0
    %237 = vmatprep.subr.mxu0 0.0
    %238 = vmatpush2.msra.mxu0 0.0
    %239 = vmatprep.subr.mxu0 0.0
    %240 = vmatpush2.msra.mxu0 0.0
    %241 = vmatprep.subr.mxu0 0.0
    %242 = vmatpush2.msra.mxu0 0.0
    %243 = vmatprep.subr.mxu0 0.0
    %244 = vmatpush2.msra.mxu0 0.0
    %245 = vmatprep.subr.mxu0 0.0
    %246 = vmatpush2.msra.mxu0 0.0
    %247 = vmatprep.mubr.f32.mxu0 0.0
    %248 = vmatmul.mubr.f32.gmra.mxu0 %v136
    %v249 = vpop.f32.mrf.mxu0
    %v250 = vadd.f32 0.0, %v249
    %v251 = vpop.f32.mrf.mxu0
    %252 = vmatprep.mubr.f32.mxu0 0.0
    %253 = vmatmul.mubr.f32.gmra.mxu0 %v139
    %v254 = vpop.f32.mrf.mxu0
    %v255 = vadd.f32 0.0, %v254
    %v256 = vpop.f32.mrf.mxu0
    %257 = vmatprep.mubr.f32.mxu0 0.0
    %258 = vmatmul.mubr.f32.gmra.mxu0 %v142
    %v259 = vpop.f32.mrf.mxu0
    %v260 = vadd.f32 0.0, %v259
    %v261 = vpop.f32.mrf.mxu0
    %262 = vmatprep.mubr.f32.mxu0 0.0
    %263 = vmatmul.mubr.f32.gmra.mxu0 %v145
    %v264 = vpop.f32.mrf.mxu0
    %v265 = vadd.f32 0.0, %v264
    %v266 = vpop.f32.mrf.mxu0
    %267 = vmatprep.mubr.f32.mxu0 0.0
    %268 = vmatmul.mubr.f32.gmra.mxu0 %v148
    %v269 = vpop.f32.mrf.mxu0
    %v270 = vadd.f32 0.0, %v269
    %v271 = vpop.f32.mrf.mxu0
    %272 = vmatprep.mubr.f32.mxu0 0.0
    %273 = vmatmul.mubr.f32.gmra.mxu0 %v151
    %v274 = vpop.f32.mrf.mxu0
    %v275 = vadd.f32 0.0, %v274
    %v276 = vpop.f32.mrf.mxu0
    %277 = vmatprep.mubr.f32.mxu0 0.0
    %278 = vmatmul.mubr.f32.gmra.mxu0 %v154
    %v279 = vpop.f32.mrf.mxu0
    %v280 = vadd.f32 0.0, %v279
    %v281 = vpop.f32.mrf.mxu0
    %282 = vmatprep.mubr.f32.mxu0 0.0
    %283 = vmatmul.mubr.f32.gmra.mxu0 %v157
    %v284 = vpop.f32.mrf.mxu0
    %v285 = vadd.f32 0.0, %v284
    %v286 = vpop.f32.mrf.mxu0
    %287 = vmatprep.mubr.f32.mxu0 0.0
    %288 = vmatmul.mubr.f32.gmra.mxu0 %v160
    %v289 = vpop.f32.mrf.mxu0
    %v290 = vadd.f32 0.0, %v289
    %v291 = vpop.f32.mrf.mxu0
    %292 = vmatprep.mubr.f32.mxu0 0.0
    %293 = vmatmul.mubr.f32.gmra.mxu0 %v163
    %v294 = vpop.f32.mrf.mxu0
    %v295 = vadd.f32 0.0, %v294
    %v296 = vpop.f32.mrf.mxu0
    %297 = vmatprep.mubr.f32.mxu0 0.0
    %298 = vmatmul.mubr.f32.gmra.mxu0 %v166
    %v299 = vpop.f32.mrf.mxu0
    %v300 = vadd.f32 0.0, %v299
    %v301 = vpop.f32.mrf.mxu0
    %302 = vmatprep.mubr.f32.mxu0 0.0
    %303 = vmatmul.mubr.f32.gmra.mxu0 %v169
    %v304 = vpop.f32.mrf.mxu0
    %v305 = vadd.f32 0.0, %v304
    %v306 = vpop.f32.mrf.mxu0
    %307 = vmatprep.mubr.f32.mxu0 0.0
    %308 = vmatmul.mubr.f32.gmra.mxu0 %v172
    %v309 = vpop.f32.mrf.mxu0
    %v310 = vadd.f32 0.0, %v309
    %v311 = vpop.f32.mrf.mxu0
    %312 = vmatprep.mubr.f32.mxu0 0.0
    %313 = vmatmul.mubr.f32.gmra.mxu0 %v175
    %v314 = vpop.f32.mrf.mxu0
    %v315 = vadd.f32 0.0, %v314
    %v316 = vpop.f32.mrf.mxu0
    %317 = vmatprep.mubr.f32.mxu0 0.0
    %318 = vmatmul.mubr.f32.gmra.mxu0 %v178
    %v319 = vpop.f32.mrf.mxu0
    %v320 = vadd.f32 0.0, %v319
    %v321 = vpop.f32.mrf.mxu0
    %322 = vmatprep.mubr.f32.mxu0 0.0
    %323 = vmatmul.mubr.f32.gmra.mxu0 %v181
    %v324 = vpop.f32.mrf.mxu0
    %v325 = vadd.f32 0.0, %v324
    %v326 = vpop.f32.mrf.mxu0
    %327 = vdwg.mxu0
    %328 = vmax.xlane.f32.xlu0 %v250
    %v329 = vpop.xlane.xlu0 %328
    %330 = vmax.xlane.f32.xlu0 %v255
    %v331 = vpop.xlane.xlu0 %330
    %332 = vmax.xlane.f32.xlu0 %v260
    %v333 = vpop.xlane.xlu0 %332
    %334 = vmax.xlane.f32.xlu0 %v265
    %v335 = vpop.xlane.xlu0 %334
    %336 = vmax.xlane.f32.xlu0 %v270
    %v337 = vpop.xlane.xlu0 %336
    %338 = vmax.xlane.f32.xlu0 %v275
    %v339 = vpop.xlane.xlu0 %338
    %340 = vmax.xlane.f32.xlu0 %v280
    %v341 = vpop.xlane.xlu0 %340
    %342 = vmax.xlane.f32.xlu0 %v285
    %v343 = vpop.xlane.xlu0 %342
    %344 = vmax.xlane.f32.xlu0 %v290
    %v345 = vpop.xlane.xlu0 %344
    %346 = vmax.xlane.f32.xlu0 %v295
    %v347 = vpop.xlane.xlu0 %346
    %348 = vmax.xlane.f32.xlu0 %v300
    %v349 = vpop.xlane.xlu0 %348
    %350 = vmax.xlane.f32.xlu0 %v305
    %v351 = vpop.xlane.xlu0 %350
    %352 = vmax.xlane.f32.xlu0 %v310
    %v353 = vpop.xlane.xlu0 %352
    %354 = vmax.xlane.f32.xlu0 %v315
    %v355 = vpop.xlane.xlu0 %354
    %356 = vmax.xlane.f32.xlu0 %v320
    %v357 = vpop.xlane.xlu0 %356
    %358 = vmax.xlane.f32.xlu0 %v325
    %v359 = vpop.xlane.xlu0 %358
    %v360 = vsub.f32 %v250, %v329
    %v361 = vsub.f32 %v255, %v331
    %v362 = vsub.f32 %v260, %v333
    %v363 = vsub.f32 %v265, %v335
    %v364 = vsub.f32 %v270, %v337
    %v365 = vsub.f32 %v275, %v339
    %v366 = vsub.f32 %v280, %v341
    %v367 = vsub.f32 %v285, %v343
    %v368 = vsub.f32 %v290, %v345
    %v369 = vsub.f32 %v295, %v347
    %v370 = vsub.f32 %v300, %v349
    %v371 = vsub.f32 %v305, %v351
    %v372 = vsub.f32 %v310, %v353
    %v373 = vsub.f32 %v315, %v355
    %v374 = vsub.f32 %v320, %v357
    %v375 = vsub.f32 %v325, %v359
    %v376 = vmul.f32 %v360, 1.442695
    %v377 = vpow.pop %v376
    %v378 = vmul.f32 %v361, 1.442695
    %v379 = vpow.pop %v378
    %v380 = vmul.f32 %v362, 1.442695
    %v381 = vpow.pop %v380
    %v382 = vmul.f32 %v363, 1.442695
    %v383 = vpow.pop %v382
    %v384 = vmul.f32 %v364, 1.442695
    %v385 = vpow.pop %v384
    %v386 = vmul.f32 %v365, 1.442695
    %v387 = vpow.pop %v386
    %v388 = vmul.f32 %v366, 1.442695
    %v389 = vpow.pop %v388
    %v390 = vmul.f32 %v367, 1.442695
    %v391 = vpow.pop %v390
    %v392 = vmul.f32 %v368, 1.442695
    %v393 = vpow.pop %v392
    %v394 = vmul.f32 %v369, 1.442695
    %v395 = vpow.pop %v394
    %v396 = vmul.f32 %v370, 1.442695
    %v397 = vpow.pop %v396
    %v398 = vmul.f32 %v371, 1.442695
    %v399 = vpow.pop %v398
    %v400 = vmul.f32 %v372, 1.442695
    %v401 = vpow.pop %v400
    %v402 = vmul.f32 %v373, 1.442695
    %v403 = vpow.pop %v402
    %v404 = vmul.f32 %v374, 1.442695
    %v405 = vpow.pop %v404
    %v406 = vmul.f32 %v375, 1.442695
    %v407 = vpow.pop %v406
    %408 = vadd.xlane.f32.xlu0 %v377
    %v409 = vpop.xlane.xlu0 %408
    %410 = vadd.xlane.f32.xlu0 %v379
    %v411 = vpop.xlane.xlu0 %410
    %412 = vadd.xlane.f32.xlu0 %v381
    %v413 = vpop.xlane.xlu0 %412
    %414 = vadd.xlane.f32.xlu0 %v383
    %v415 = vpop.xlane.xlu0 %414
    %416 = vadd.xlane.f32.xlu0 %v385
    %v417 = vpop.xlane.xlu0 %416
    %418 = vadd.xlane.f32.xlu0 %v387
    %v419 = vpop.xlane.xlu0 %418
    %420 = vadd.xlane.f32.xlu0 %v389
    %v421 = vpop.xlane.xlu0 %420
    %422 = vadd.xlane.f32.xlu0 %v391
    %v423 = vpop.xlane.xlu0 %422
    %424 = vadd.xlane.f32.xlu0 %v393
    %v425 = vpop.xlane.xlu0 %424
    %426 = vadd.xlane.f32.xlu0 %v395
    %v427 = vpop.xlane.xlu0 %426
    %428 = vadd.xlane.f32.xlu0 %v397
    %v429 = vpop.xlane.xlu0 %428
    %430 = vadd.xlane.f32.xlu0 %v399
    %v431 = vpop.xlane.xlu0 %430
    %432 = vadd.xlane.f32.xlu0 %v401
    %v433 = vpop.xlane.xlu0 %432
    %434 = vadd.xlane.f32.xlu0 %v403
    %v435 = vpop.xlane.xlu0 %434
    %436 = vadd.xlane.f32.xlu0 %v405
    %v437 = vpop.xlane.xlu0 %436
    %438 = vadd.xlane.f32.xlu0 %v407
    %v439 = vpop.xlane.xlu0 %438
    %v440 = vrcp.pop %v409
    %v441 = vmul.f32 %v377, %v440
    %v442 = vrcp.pop %v411
    %v443 = vmul.f32 %v379, %v442
    %v444 = vrcp.pop %v413
    %v445 = vmul.f32 %v381, %v444
    %v446 = vrcp.pop %v415
    %v447 = vmul.f32 %v383, %v446
    %v448 = vrcp.pop %v417
    %v449 = vmul.f32 %v385, %v448
    %v450 = vrcp.pop %v419
    %v451 = vmul.f32 %v387, %v450
    %v452 = vrcp.pop %v421
    %v453 = vmul.f32 %v389, %v452
    %v454 = vrcp.pop %v423
    %v455 = vmul.f32 %v391, %v454
    %v456 = vrcp.pop %v425
    %v457 = vmul.f32 %v393, %v456
    %v458 = vrcp.pop %v427
    %v459 = vmul.f32 %v395, %v458
    %v460 = vrcp.pop %v429
    %v461 = vmul.f32 %v397, %v460
    %v462 = vrcp.pop %v431
    %v463 = vmul.f32 %v399, %v462
    %v464 = vrcp.pop %v433
    %v465 = vmul.f32 %v401, %v464
    %v466 = vrcp.pop %v435
    %v467 = vmul.f32 %v403, %v466
    %v468 = vrcp.pop %v437
    %v469 = vmul.f32 %v405, %v468
    %v470 = vrcp.pop %v439
    %v471 = vmul.f32 %v407, %v470
    %472 = vst [vmem:[#allocation2] sm:$0xff] %v441
    %473 = vst [vmem:[#allocation2 + $0x8] sm:$0xff] %v443
    %474 = vst [vmem:[#allocation2 + $0x10] sm:$0xff] %v445
    %475 = vst [vmem:[#allocation2 + $0x18] sm:$0xff] %v447
    %476 = vst [vmem:[#allocation2 + $0x20] sm:$0xff] %v449
    %477 = vst [vmem:[#allocation2 + $0x28] sm:$0xff] %v451
    %478 = vst [vmem:[#allocation2 + $0x30] sm:$0xff] %v453
    %479 = vst [vmem:[#allocation2 + $0x38] sm:$0xff] %v455
    %480 = vst [vmem:[#allocation2 + $0x40] sm:$0xff] %v457
    %481 = vst [vmem:[#allocation2 + $0x48] sm:$0xff] %v459
    %482 = vst [vmem:[#allocation2 + $0x50] sm:$0xff] %v461
    %483 = vst [vmem:[#allocation2 + $0x58] sm:$0xff] %v463
    %484 = vst [vmem:[#allocation2 + $0x60] sm:$0xff] %v465
    %485 = vst [vmem:[#allocation2 + $0x68] sm:$0xff] %v467
    %486 = vst [vmem:[#allocation2 + $0x70] sm:$0xff] %v469
    %487 = vst [vmem:[#allocation2 + $0x78] sm:$0xff] %v471
    // Predicated region
    $region10: #{tpu_custom_call.1} parent=1 // pred_check
      _
    $region11: #{tpu_custom_call.1} parent=1 // pred_check_branch
      %489 = sbr.rel (0) target = $region13
    $region12: #{tpu_custom_call.1} parent=1 // pred_region
      %s491 = ssub.s32 2048, 2048
      %492 = vsyncadd [#allocation3], %s491
      %s493 = sshll.u32 [#allocation2], 4
      %s494 = int_to_ptr.vmem [resolvable:$true] %s493
      %499 = dma.vmem_to_hbm [thread:$0]  %s494, 2048, %s2, [#allocation3], 128, 128, 8
    $region13: #{tpu_custom_call.1} parent=1 // pred_fallthru
      _
    // Predicated region
    $region14: #{tpu_custom_call.1} parent=1 // pred_check
      _
    $region15: #{tpu_custom_call.1} parent=1 // pred_check_branch
      %501 = sbr.rel (0) target = $region17
    $region16: #{tpu_custom_call.1} parent=1 // pred_region
      %502 = dma.done [#allocation3], 2048
    $region17: #{tpu_custom_call.1} parent=1 // pred_fallthru
      _
    %503 = vsyncpa [#allocation3], 1

</llo_original>
